<compile_context>
chip_gen: v6e
topology: v6e:2x2x1
jax: 0.10.0
libtpu: 0.0.40
codegen_flags: <defaults>
</compile_context>

<pallas_src>
import math
from functools import partial

import jax
import jax.numpy as jnp
from jax import lax
from jax.experimental import pallas as pl
from jax.experimental.pallas import tpu as pltpu

# -------------------------- small synthetic X3D config ----------------------
BATCH = 2
IN_CH = 3
NUM_FRAMES = 4
CROP = 32                      # DATA.TRAIN_CROP_SIZE
DIM_C1 = 8                     # X3D.DIM_C1
SCALE_RES2 = False
W_MUL = 1.0                    # X3D.WIDTH_FACTOR
D_MUL = 0.2                    # X3D.DEPTH_FACTOR  (-> 1 block per stage)
BOTTLENECK_FACTOR = 2.0
SE_RATIO = 0.0625
DIM_C5 = 64                    # X3D.DIM_C5
NUM_CLASSES = 16
SPAT_SZ = int(math.ceil(CROP / 32.0))
BN_EPS = 1e-5

TILE_M = 512                   # row tile for pointwise matmuls
ACT_DTYPE = jnp.bfloat16       # inter-kernel activation storage dtype


# ------------------------------ helpers (as in slowfast) --------------------
def round_width(width, multiplier, min_width=8, divisor=8):
    if not multiplier:
        return width
    width *= multiplier
    min_width = min_width or divisor
    width_out = max(min_width, int(width + divisor / 2) // divisor * divisor)
    if width_out < 0.9 * width:
        width_out += divisor
    return int(width_out)


def se_round_width(width, multiplier, min_width=8, divisor=8):
    # SE._round_width in slowfast/models/operators.py (same formula).
    return round_width(width, multiplier, min_width, divisor)


# ------------------------------ in-kernel activations -----------------------
def _sigmoid(y):
    # numerically stable logistic using only exp/abs/where (TPU-lowerable)
    e = jnp.exp(-jnp.abs(y))
    return jnp.where(y >= 0, 1.0 / (1.0 + e), e / (1.0 + e))


def _apply_act(y, act):
    if act == "relu":
        return jnp.maximum(y, 0.0)
    if act == "sigmoid":
        return _sigmoid(y)
    if act == "swish":
        return y * _sigmoid(y)
    return y


# ------------------------------ Pallas kernels -------------------------------
def _mm_kernel(x_ref, w_ref, b_ref, o_ref, *, act):
    # y = act(x @ w + b); BN scale is pre-folded into w, so no extra multiply.
    y = jnp.dot(x_ref[...], w_ref[...], preferred_element_type=jnp.float32)
    y = y + b_ref[...]
    o_ref[...] = _apply_act(y, act).astype(o_ref.dtype)


def pointwise(x2d, w, shift, act="none", out_dtype=None):
    """y = act(x2d @ w + shift), rows tiled over a parallel 1-D grid."""
    M, cin = x2d.shape
    cout = w.shape[1]
    out_dtype = out_dtype or ACT_DTYPE
    tile = TILE_M if M >= TILE_M else M
    return pl.pallas_call(
        partial(_mm_kernel, act=act),
        out_shape=jax.ShapeDtypeStruct((M, cout), out_dtype),
        grid=(pl.cdiv(M, tile),),
        in_specs=[
            pl.BlockSpec((tile, cin), lambda i: (i, 0)),
            pl.BlockSpec((cin, cout), lambda i: (0, 0)),
            pl.BlockSpec((1, cout), lambda i: (0, 0)),
        ],
        out_specs=pl.BlockSpec((tile, cout), lambda i: (i, 0)),
        compiler_params=pltpu.CompilerParams(dimension_semantics=("parallel",)),
    )(x2d.astype(ACT_DTYPE), w.astype(ACT_DTYPE),
      shift.reshape(1, cout).astype(jnp.float32))


def _dwconv_kernel(x_ref, w_ref, b_ref, o_ref, *, taps, kt, khw, act):
    """Depthwise 3-D conv, one output frame per grid step (strided output
    computed directly; H/W strides were turned into contiguous windows by the
    wrapper-side phase reorder)."""
    t = pl.program_id(1)
    _, ho, wo, c = o_ref.shape
    w = w_ref[...]                               # (n_taps, C), BN scale folded
    acc = jnp.zeros((ho, wo, c), jnp.float32)
    for dt in range(kt):
        frame = x_ref[t + dt].astype(jnp.float32)   # (Hr, Wr, C) loaded once
        for k in range(khw):
            idx = dt * khw + k
            _, hs, ws = taps[idx]
            patch = frame[hs:hs + ho, ws:ws + wo, :]
            acc = acc + patch * w[idx]
    acc = acc + b_ref[...]
    o_ref[...] = _apply_act(acc, act).astype(o_ref.dtype)[None]


def _reorder_axis(x, axis, stride):
    """Even/odd (residue-class) reorder so a strided tap window becomes a
    contiguous slice inside the kernel.  Identity for stride 1."""
    if stride == 1:
        return x, None
    parts = [lax.slice_in_dim(x, r, x.shape[axis], stride, axis)
             for r in range(stride)]
    offsets, off = [], 0
    for p in parts:
        offsets.append(off)
        off += p.shape[axis]
    return jnp.concatenate(parts, axis=axis), offsets


def _tap_start(d, stride, offsets):
    if stride == 1:
        return d
    return offsets[d % stride] + d // stride


def dwconv_bn_act(x, ksize, pad, stride_hw, w_taps, scale, shift, act="none"):
    """Depthwise (groups == channels) 3-D conv fused with BN + act, strided
    output computed directly, grid tiled over (N, T_out)."""
    kt, kh, kw = ksize
    pt, ph, pw_ = pad
    sh, sw = stride_hw
    n, t, h, w, c = x.shape
    xp = jnp.pad(x.astype(ACT_DTYPE),
                 ((0, 0), (pt, pt), (ph, ph), (pw_, pw_), (0, 0)))
    to = t + 2 * pt - kt + 1
    ho = (h + 2 * ph - kh) // sh + 1
    wo = (w + 2 * pw_ - kw) // sw + 1
    xp, hoff = _reorder_axis(xp, 2, sh)
    xp, woff = _reorder_axis(xp, 3, sw)
    tp_, hr, wr = xp.shape[1], xp.shape[2], xp.shape[3]
    # fold BN scale into the taps (depthwise -> per-channel scaling of taps)
    wt = (w_taps.reshape(kt * kh * kw, c) * scale[None, :]).astype(jnp.float32)
    taps = []
    for dt in range(kt):
        for dh in range(kh):
            for dw in range(kw):
                taps.append((dt, _tap_start(dh, sh, hoff),
                             _tap_start(dw, sw, woff)))
    return pl.pallas_call(
        partial(_dwconv_kernel, taps=tuple(taps), kt=kt, khw=kh * kw, act=act),
        out_shape=jax.ShapeDtypeStruct((n, to, ho, wo, c), ACT_DTYPE),
        grid=(n, to),
        in_specs=[
            pl.BlockSpec((None, tp_, hr, wr, c), lambda i, j: (i, 0, 0, 0, 0)),
            pl.BlockSpec((kt * kh * kw, c), lambda i, j: (0, 0)),
            pl.BlockSpec((1, c), lambda i, j: (0, 0)),
        ],
        out_specs=pl.BlockSpec((None, 1, ho, wo, c),
                               lambda i, j: (i, j, 0, 0, 0)),
        compiler_params=pltpu.CompilerParams(
            dimension_semantics=("parallel", "arbitrary")),
    )(xp, wt, shift.reshape(1, c).astype(jnp.float32))


def _se_kernel(x_ref, w1_ref, b1_ref, w2_ref, b2_ref, o_ref):
    # fused SE: global avg pool + fc1(+ReLU) + fc2(+Sigmoid), one batch elem.
    x = x_ref[...].astype(jnp.float32)                    # (THW, C)
    p = jnp.mean(x, axis=0, keepdims=True)                # (1, C)
    h = jnp.dot(p, w1_ref[...], preferred_element_type=jnp.float32) + b1_ref[...]
    h = jnp.maximum(h, 0.0)
    g = jnp.dot(h, w2_ref[...], preferred_element_type=jnp.float32) + b2_ref[...]
    o_ref[...] = _sigmoid(g).astype(o_ref.dtype)


def se_gate(h, w1, b1, w2, b2):
    n, t, hh, ww, c = h.shape
    thw = t * hh * ww
    dfc = w1.shape[1]
    return pl.pallas_call(
        _se_kernel,
        out_shape=jax.ShapeDtypeStruct((n, 1, c), jnp.float32),
        grid=(n,),
        in_specs=[
            pl.BlockSpec((None, thw, c), lambda i: (i, 0, 0)),
            pl.BlockSpec((c, dfc), lambda i: (0, 0)),
            pl.BlockSpec((1, dfc), lambda i: (0, 0)),
            pl.BlockSpec((dfc, c), lambda i: (0, 0)),
            pl.BlockSpec((1, c), lambda i: (0, 0)),
        ],
        out_specs=pl.BlockSpec((None, 1, c), lambda i: (i, 0, 0)),
        compiler_params=pltpu.CompilerParams(dimension_semantics=("parallel",)),
    )(h.reshape(n, thw, c), w1.astype(jnp.float32),
      b1.reshape(1, dfc).astype(jnp.float32),
      w2.astype(jnp.float32), b2.reshape(1, c).astype(jnp.float32))


def _gate_pw_res_kernel(x_ref, g_ref, w_ref, b_ref, r_ref, o_ref):
    # fused block tail: relu(swish(x * gate) @ Wc(+BN scale) + shift + residual)
    x = x_ref[...].astype(jnp.float32)                    # (tile, Cin)
    xg = x * g_ref[...]                                   # SE channel gate
    xg = _apply_act(xg, "swish")
    y = jnp.dot(xg.astype(w_ref.dtype), w_ref[...],
                preferred_element_type=jnp.float32)
    y = y + b_ref[...] + r_ref[...].astype(jnp.float32)
    o_ref[...] = jnp.maximum(y, 0.0).astype(o_ref.dtype)


def gate_pw_res(h, g, w, scale, shift, r):
    n, t, hh, ww, cin = h.shape
    thw = t * hh * ww
    cout = w.shape[1]
    wf = (w * scale[None, :]).astype(ACT_DTYPE)
    x = h.reshape(n, thw, cin)
    rr = r.reshape(n, thw, cout).astype(ACT_DTYPE)
    tile = thw if thw <= TILE_M else TILE_M
    out = pl.pallas_call(
        _gate_pw_res_kernel,
        out_shape=jax.ShapeDtypeStruct((n, thw, cout), ACT_DTYPE),
        grid=(n, pl.cdiv(thw, tile)),
        in_specs=[
            pl.BlockSpec((None, tile, cin), lambda i, j: (i, j, 0)),
            pl.BlockSpec((None, 1, cin), lambda i, j: (i, 0, 0)),
            pl.BlockSpec((cin, cout), lambda i, j: (0, 0)),
            pl.BlockSpec((1, cout), lambda i, j: (0, 0)),
            pl.BlockSpec((None, tile, cout), lambda i, j: (i, j, 0)),
        ],
        out_specs=pl.BlockSpec((None, tile, cout), lambda i, j: (i, j, 0)),
        compiler_params=pltpu.CompilerParams(
            dimension_semantics=("parallel", "parallel")),
    )(x, g, wf, shift.reshape(1, cout).astype(jnp.float32), rr)
    return out.reshape(n, t, hh, ww, cout)


def _head_kernel(x_ref, w5_ref, b5_ref, wl_ref, wp_ref, bp_ref, o_ref):
    # fused head: conv5+BN+ReLU -> AvgPool3d(full extent) -> lin5+ReLU ->
    # projection + eval-time Softmax.  One batch element per grid step.
    x = x_ref[...]                                        # (T*s*s, C_in) bf16
    h = jnp.dot(x, w5_ref[...], preferred_element_type=jnp.float32) + b5_ref[...]
    h = jnp.maximum(h, 0.0)
    p = jnp.mean(h, axis=0, keepdims=True)                # AvgPool3d == mean
    p = jnp.dot(p.astype(wl_ref.dtype), wl_ref[...],
                preferred_element_type=jnp.float32)
    p = jnp.maximum(p, 0.0)
    y = jnp.dot(p.astype(wp_ref.dtype), wp_ref[...],
                preferred_element_type=jnp.float32) + bp_ref[...]
    m = jnp.max(y, axis=-1, keepdims=True)
    e = jnp.exp(y - m)
    o_ref[...] = (e / jnp.sum(e, axis=-1, keepdims=True)).astype(o_ref.dtype)


# ------------------------------ layer wrappers -------------------------------
def pw_conv(x, w, scale, shift, act="none", stride=1):
    """1x1x1 Conv3d (+ fused per-channel BN affine + act) over (N,T,H,W,C)."""
    if stride > 1:
        x = x[:, :, ::stride, ::stride, :]
    n, t, h, w_, c = x.shape
    wf = w * scale[None, :]                    # fold BN scale into weights
    y = pointwise(x.reshape(n * t * h * w_, c), wf, shift, act=act)
    return y.reshape(n, t, h, w_, w.shape[1])


def stem_forward(x, p):
    # conv_xy: dense (1,3,3) conv, stride (1,2,2), pad (0,1,1) -> im2col+matmul
    n, t, h, w, c = x.shape
    xp = jnp.pad(x, ((0, 0), (0, 0), (1, 1), (1, 1), (0, 0)))
    ho, wo = (h + 2 - 3) // 2 + 1, (w + 2 - 3) // 2 + 1
    cols = []
    for dh in range(3):
        for dw in range(3):
            cols.append(xp[:, :, dh:dh + 2 * (ho - 1) + 1:2,
                           dw:dw + 2 * (wo - 1) + 1:2, :])
    patches = jnp.concatenate(cols, axis=-1)              # (N,T,Ho,Wo,9*C)
    cout = p["w_xy"].shape[1]
    y = pointwise(patches.reshape(-1, 9 * c), p["w_xy"],
                  jnp.zeros((cout,), jnp.float32), act="none")
    y = y.reshape(n, t, ho, wo, cout)
    # conv: depthwise (5,1,1) temporal conv fused with BN + ReLU
    y = dwconv_bn_act(y, (5, 1, 1), (2, 0, 0), (1, 1),
                      p["w_t"], p["bn_s"], p["bn_b"], act="relu")
    return y


def x3d_block(x, p):
    s = p["stride"]
    # branch2.a : 1x1x1 conv + BN + ReLU
    h = pw_conv(x, p["a_w"], p["a_bn_s"], p["a_bn_b"], act="relu")
    # branch2.b : depthwise 3x3x3 conv (spatial stride s) + BN (scale folded)
    h = dwconv_bn_act(h, (3, 3, 3), (1, 1, 1), (s, s),
                      p["b_w"], p["b_bn_s"], p["b_bn_b"], act="none")
    # SE gate (fused pool + fc1 + fc2 + sigmoid)
    if p["has_se"]:
        g = se_gate(h, p["se_fc1_w"], p["se_fc1_b"],
                    p["se_fc2_w"], p["se_fc2_b"])
    else:
        g = jnp.ones((h.shape[0], 1, h.shape[-1]), jnp.float32)
    # shortcut (branch1)
    if p["has_branch1"]:
        sc = pw_conv(x, p["br1_w"], p["br1_bn_s"], p["br1_bn_b"],
                     act="none", stride=s)
    else:
        sc = x
    # fused: swish(h*gate) -> branch2.c conv + BN + residual add + ReLU
    return gate_pw_res(h, g, p["c_w"], p["c_bn_s"], p["c_bn_b"], sc)


def head_forward(x, p):
    n, t, hh, ww, c = x.shape
    # AvgPool3d([NUM_FRAMES, spat, spat]) == full-extent mean at these shapes
    assert (t, hh, ww) == (NUM_FRAMES, SPAT_SZ, SPAT_SZ)
    rows = t * hh * ww
    w5 = (p["c5_w"] * p["c5_bn_s"][None, :]).astype(ACT_DTYPE)
    di = w5.shape[1]
    dc5 = p["lin5_w"].shape[1]
    nc = p["proj_w"].shape[1]
    out = pl.pallas_call(
        _head_kernel,
        out_shape=jax.ShapeDtypeStruct((n, 1, nc), jnp.float32),
        grid=(n,),
        in_specs=[
            pl.BlockSpec((None, rows, c), lambda i: (i, 0, 0)),
            pl.BlockSpec((c, di), lambda i: (0, 0)),
            pl.BlockSpec((1, di), lambda i: (0, 0)),
            pl.BlockSpec((di, dc5), lambda i: (0, 0)),
            pl.BlockSpec((dc5, nc), lambda i: (0, 0)),
            pl.BlockSpec((1, nc), lambda i: (0, 0)),
        ],
        out_specs=pl.BlockSpec((None, 1, nc), lambda i: (i, 0, 0)),
        compiler_params=pltpu.CompilerParams(dimension_semantics=("parallel",)),
    )(x.reshape(n, rows, c), w5,
      p["c5_bn_b"].reshape(1, di).astype(jnp.float32),
      p["lin5_w"].astype(ACT_DTYPE), p["proj_w"].astype(ACT_DTYPE),
      p["proj_b"].reshape(1, nc).astype(jnp.float32))
    # mean over (T,H,W) after softmax is identity here (all dims are 1).
    return out.reshape(n, nc)


def x3d_forward(x_ncthw, params):
    x = jnp.transpose(x_ncthw, (0, 2, 3, 4, 1))   # NCTHW -> NTHWC
    x = stem_forward(x, params["s1"])
    for sp in params["stages"]:
        for bp in sp["blocks"]:
            x = x3d_block(x, bp)
    return head_forward(x, params["head"])


# ------------------------------ parameter construction ----------------------
class ParamGen:
    def __init__(self, key):
        self.key = key

    def _next(self):
        self.key, k = jax.random.split(self.key)
        return k

    def normal(self, shape, std=0.05):
        return std * jax.random.normal(self._next(), shape, jnp.float32)

    def bn(self, c):
        # synthetic "trained" BN folded into an inference-time affine transform
        gamma = 1.0 + 0.1 * jax.random.normal(self._next(), (c,), jnp.float32)
        beta = 0.1 * jax.random.normal(self._next(), (c,), jnp.float32)
        mean = 0.1 * jax.random.normal(self._next(), (c,), jnp.float32)
        var = 1.0 + 0.1 * jax.random.uniform(self._next(), (c,), jnp.float32)
        scale = gamma / jnp.sqrt(var + BN_EPS)
        shift = beta - mean * scale
        return scale, shift


def build_x3d_params(key):
    pg = ParamGen(key)
    dim_res2 = round_width(DIM_C1, 2.0, divisor=8) if SCALE_RES2 else DIM_C1
    dim_res3 = round_width(dim_res2, 2.0, divisor=8)
    dim_res4 = round_width(dim_res3, 2.0, divisor=8)
    dim_res5 = round_width(dim_res4, 2.0, divisor=8)
    block_basis = [[1, dim_res2, 2], [2, dim_res3, 2],
                   [5, dim_res4, 2], [3, dim_res5, 2]]
    dim_res1 = round_width(DIM_C1, W_MUL)

    params = {}
    s1 = {"w_xy": pg.normal((3 * 3 * IN_CH, dim_res1)),
          "w_t": pg.normal((5 * 1 * 1, dim_res1))}
    s1["bn_s"], s1["bn_b"] = pg.bn(dim_res1)
    params["s1"] = s1

    stages = []
    dim_in = dim_res1
    dim_inner = dim_in
    for blk in block_basis:
        dim_out = round_width(blk[1], W_MUL)
        dim_inner = int(BOTTLENECK_FACTOR * dim_out)
        n_rep = int(math.ceil(D_MUL * blk[0]))
        stride = blk[2]
        blocks = []
        for i in range(n_rep):
            b_stride = stride if i == 0 else 1
            b_dim_in = dim_in if i == 0 else dim_out
            has_branch1 = (b_dim_in != dim_out) or (b_stride != 1)
            has_se = (((i + 1) % 2) != 0) and (SE_RATIO > 0.0)
            dim_fc = se_round_width(dim_inner, SE_RATIO)
            p = {"stride": b_stride, "has_branch1": has_branch1, "has_se": has_se,
                 "a_w": pg.normal((b_dim_in, dim_inner)),
                 "b_w": pg.normal((3 * 3 * 3, dim_inner)),
                 "c_w": pg.normal((dim_inner, dim_out))}
            p["a_bn_s"], p["a_bn_b"] = pg.bn(dim_inner)
            p["b_bn_s"], p["b_bn_b"] = pg.bn(dim_inner)
            p["c_bn_s"], p["c_bn_b"] = pg.bn(dim_out)
            if has_se:
                p["se_fc1_w"] = pg.normal((dim_inner, dim_fc))
                p["se_fc1_b"] = pg.normal((dim_fc,))
                p["se_fc2_w"] = pg.normal((dim_fc, dim_inner))
                p["se_fc2_b"] = pg.normal((dim_inner,))
            if has_branch1:
                p["br1_w"] = pg.normal((b_dim_in, dim_out))
                p["br1_bn_s"], p["br1_bn_b"] = pg.bn(dim_out)
            blocks.append(p)
        stages.append({"blocks": blocks})
        dim_in = dim_out
    params["stages"] = stages

    head = {"c5_w": pg.normal((dim_in, dim_inner)),
            "lin5_w": pg.normal((dim_inner, DIM_C5)),
            "proj_w": pg.normal((DIM_C5, NUM_CLASSES)),
            "proj_b": pg.normal((NUM_CLASSES,))}
    head["c5_bn_s"], head["c5_bn_b"] = pg.bn(dim_inner)
    params["head"] = head
    return params


# ------------------------------ main -----------------------------------------
if __name__ == "__main__":
    key = jax.random.PRNGKey(0)
    pkey, xkey = jax.random.split(key)
    params = build_x3d_params(pkey)

    # PyTorch-style input layout: (N, C, T, H, W)
    x = jax.random.normal(xkey, (BATCH, IN_CH, NUM_FRAMES, CROP, CROP),
                          jnp.float32)

    out = x3d_forward(x, params)
    out = jax.block_until_ready(out)

    assert out.shape == (BATCH, NUM_CLASSES), out.shape
    assert bool(jnp.all(jnp.isfinite(out)))
    # eval-mode head applies Softmax over classes -> rows sum to 1
    assert bool(jnp.allclose(jnp.sum(out, axis=-1), 1.0, atol=1e-4))
    print("KERNEL_OK")
</pallas_src>

<mosaic_0001>
module attributes {stable_mosaic.version = 11 : i64} {
  func.func @_mm_kernel(%arg0: i32, %arg1: memref<512x27xbf16, #tpu.memory_space<vmem>>, %arg2: memref<27x8xbf16, #tpu.memory_space<vmem>>, %arg3: memref<1x8xf32, #tpu.memory_space<vmem>>, %arg4: memref<512x8xbf16, #tpu.memory_space<vmem>>) attributes {dimension_semantics = [#tpu.dimension_semantics<parallel>], iteration_bounds = array<i64: 4>, scalar_prefetch = 0 : i64, scratch_operands = 0 : i64, tpu.core_type = #tpu.core_type<tc>, window_params = [{transform_indices = @transform_0, window_bounds = array<i64: 512, 27>}, {pipeline_mode = #tpu.pipeline_mode<synchronous>, transform_indices = @transform_1, window_bounds = array<i64: 27, 8>}, {pipeline_mode = #tpu.pipeline_mode<synchronous>, transform_indices = @transform_2, window_bounds = array<i64: 1, 8>}, {transform_indices = @transform_3, window_bounds = array<i64: 512, 8>}]} {
    %c0 = arith.constant 0 : index
    %c0_0 = arith.constant 0 : index
    %0 = vector.load %arg1[%c0, %c0_0] : memref<512x27xbf16, #tpu.memory_space<vmem>>, vector<512x27xbf16>
    %c0_1 = arith.constant 0 : index
    %c0_2 = arith.constant 0 : index
    %1 = vector.load %arg2[%c0_1, %c0_2] : memref<27x8xbf16, #tpu.memory_space<vmem>>, vector<27x8xbf16>
    %cst = arith.constant dense<0.000000e+00> : vector<512x8xf32>
    %2 = tpu.matmul %0, %1, %cst {dimension_numbers = #tpu.dot_dimension_numbers<[1], [0], [0], [1], [0, 0, 1, 1], [], []>} : vector<512x27xbf16>, vector<27x8xbf16>, vector<512x8xf32> -> vector<512x8xf32>
    %c0_3 = arith.constant 0 : index
    %c0_4 = arith.constant 0 : index
    %3 = vector.load %arg3[%c0_3, %c0_4] : memref<1x8xf32, #tpu.memory_space<vmem>>, vector<1x8xf32>
    %4 = vector.broadcast %3 : vector<1x8xf32> to vector<512x8xf32>
    %5 = arith.addf %2, %4 : vector<512x8xf32>
    %6 = arith.truncf %5 : vector<512x8xf32> to vector<512x8xbf16>
    %c0_5 = arith.constant 0 : index
    %c0_6 = arith.constant 0 : index
    %7 = vector.load %arg4[%c0_5, %c0_6] : memref<512x8xbf16, #tpu.memory_space<vmem>>, vector<512x8xbf16>
    tpu.vector_store %arg4[%c0_5, %c0_6], %6 {strides = array<i32>} : memref<512x8xbf16, #tpu.memory_space<vmem>>, vector<512x8xbf16>,
    return
  }
  func.func @transform_0(%arg0: i32) -> (i32, i32) {
    %c0_i32 = arith.constant 0 : i32
    %c0_i32_0 = arith.constant 0 : i32
    return %arg0, %c0_i32 : i32, i32
  }
  func.func @transform_1(%arg0: i32) -> (i32, i32) {
    %c0_i32 = arith.constant 0 : i32
    %c0_i32_0 = arith.constant 0 : i32
    %c0_i32_1 = arith.constant 0 : i32
    return %c0_i32, %c0_i32_0 : i32, i32
  }
  func.func @transform_2(%arg0: i32) -> (i32, i32) {
    %c0_i32 = arith.constant 0 : i32
    %c0_i32_0 = arith.constant 0 : i32
    %c0_i32_1 = arith.constant 0 : i32
    return %c0_i32, %c0_i32_0 : i32, i32
  }
  func.func @transform_3(%arg0: i32) -> (i32, i32) {
    %c0_i32 = arith.constant 0 : i32
    %c0_i32_0 = arith.constant 0 : i32
    return %arg0, %c0_i32 : i32, i32
  }
}

</mosaic_0001>

<llo_original>
// kernel: tpu_custom_call.1
$region0: #{tpu_custom_call.1}
  #allocation0 [shape = 'u32[]', space=smem, size = 0x4, offset = 0x4, fixed_abs, tag = 'smem constant byte address 0x4 - core index']
  #allocation1 [shape = 'u32[144,128]{1,0:T(1,128)}', space=vmem, size = 0x12000, scoped, tag = 'internal scratch']
  %s0 = inlined_call_operand.vmem [shape: bf16[2048,27], index: 0, kind: input, shape index: {}]
  %s1 = inlined_call_operand.vmem [shape: bf16[27,8], index: 1, kind: input, shape index: {}]
  %s2 = inlined_call_operand.vmem [shape: f32[1,8], index: 2, kind: input, shape index: {}]
  %s3 = inlined_call_operand.vmem [shape: bf16[2048,8], index: 3, kind: output, shape index: {}]
  %s4 = sld [smem:[#allocation0]]
  $region45: #{tpu_custom_call.1} parent=0
    _
  %s6 = ssub.s32 1, %s4
  %s7 = scalar_select 0, %s6, %s4
  loop: start=0, step=1, limit=6
  $region2: #{tpu_custom_call.1} parent=0 // loop_pre_header
    _
  $region3: #{tpu_custom_call.1} parent=0 // loop_header
    %s9 = sphi 0, %s13
    %p10 = scmp.ge.s32.totalorder %s9, 6
    %s19 = sphi 0, %s21
    %s22 = sphi 0, %s19
    %s23 = sphi 0, %s22
    %s39 = sphi 0, %s23
    %s43 = sphi 0, %s43
    %s45 = sphi 0, %s43
    %s46 = sphi 0, %s45
    %s60 = sphi 0, %s46
    %s64 = sphi 0, %s64
    %s66 = sphi 0, %s64
    %s67 = sphi 0, %s66
    %s81 = sphi 0, %s67
    %s87 = sphi 0, %s89
    %s90 = sphi 0, %s87
    %s91 = sphi 0, %s90
    %s107 = sphi 0, %s91
  $region4: #{tpu_custom_call.1} parent=0 // loop_header_branch
    %12 = sbr.rel (%p10) target = $region8
  $region5: #{tpu_custom_call.1} parent=0 // loop_body
    %s14 = ssub.s32 %s9, 1
    %s15 = ssub.s32 %s9, 2
    %s16 = sadd.s32 %s9, 1
    %s17 = ssub.s32 %s9, %s16
    %p18 = scmp.eq.s32.totalorder %s17, 0
    %s20 = sadd.s32 %s19, 1
    %s21 = scalar_select %p18, %s19, %s20
    %p24 = pneg %p18
    %p25 = scmp.eq.s32.totalorder %s9, 3
    %p26 = por %p24, %p25
    %p27 = scmp.ne.s32.totalorder %s19, %s22
    %p28 = scmp.eq.s32.totalorder %s9, 0
    %p29 = por %p27, %p28
    %p30 = scmp.ne.s32.totalorder %s19, %s22
    %p31 = scmp.eq.s32.totalorder %s14, 3
    %p32 = por %p30, %p31
    %p33 = scmp.ne.s32.totalorder %s22, %s23
    %p34 = scmp.eq.s32.totalorder %s14, 0
    %p35 = por %p33, %p34
    %p36 = scmp.ne.s32.totalorder %s22, %s23
    %p37 = scmp.eq.s32.totalorder %s15, 3
    %p38 = por %p36, %p37
    %p40 = scmp.ne.s32.totalorder %s23, %s39
    %p41 = scmp.eq.s32.totalorder %s15, 0
    %p42 = por %p40, %p41
    %s44 = sadd.s32 %s43, 1
    %p47 = scmp.eq.s32.totalorder %s9, 3
    %p48 = scmp.ne.s32.totalorder %s43, %s45
    %p49 = scmp.eq.s32.totalorder %s9, 0
    %p50 = por %p48, %p49
    %p51 = scmp.ne.s32.totalorder %s43, %s45
    %p52 = scmp.eq.s32.totalorder %s14, 3
    %p53 = por %p51, %p52
    %p54 = scmp.ne.s32.totalorder %s45, %s46
    %p55 = scmp.eq.s32.totalorder %s14, 0
    %p56 = por %p54, %p55
    %p57 = scmp.ne.s32.totalorder %s45, %s46
    %p58 = scmp.eq.s32.totalorder %s15, 3
    %p59 = por %p57, %p58
    %p61 = scmp.ne.s32.totalorder %s46, %s60
    %p62 = scmp.eq.s32.totalorder %s15, 0
    %p63 = por %p61, %p62
    %s65 = sadd.s32 %s64, 1
    %p68 = scmp.eq.s32.totalorder %s9, 3
    %p69 = scmp.ne.s32.totalorder %s64, %s66
    %p70 = scmp.eq.s32.totalorder %s9, 0
    %p71 = por %p69, %p70
    %p72 = scmp.ne.s32.totalorder %s64, %s66
    %p73 = scmp.eq.s32.totalorder %s14, 3
    %p74 = por %p72, %p73
    %p75 = scmp.ne.s32.totalorder %s66, %s67
    %p76 = scmp.eq.s32.totalorder %s14, 0
    %p77 = por %p75, %p76
    %p78 = scmp.ne.s32.totalorder %s66, %s67
    %p79 = scmp.eq.s32.totalorder %s15, 3
    %p80 = por %p78, %p79
    %p82 = scmp.ne.s32.totalorder %s67, %s81
    %p83 = scmp.eq.s32.totalorder %s15, 0
    %p84 = por %p82, %p83
    %s85 = ssub.s32 %s9, %s16
    %p86 = scmp.eq.s32.totalorder %s85, 0
    %s88 = sadd.s32 %s87, 1
    %s89 = scalar_select %p86, %s87, %s88
    %p92 = pneg %p86
    %p93 = scmp.eq.s32.totalorder %s9, 3
    %p94 = por %p92, %p93
    %p95 = scmp.ne.s32.totalorder %s87, %s90
    %p96 = scmp.eq.s32.totalorder %s9, 0
    %p97 = por %p95, %p96
    %p98 = scmp.ne.s32.totalorder %s87, %s90
    %p99 = scmp.eq.s32.totalorder %s14, 3
    %p100 = por %p98, %p99
    %p101 = scmp.ne.s32.totalorder %s90, %s91
    %p102 = scmp.eq.s32.totalorder %s14, 0
    %p103 = por %p101, %p102
    %p104 = scmp.ne.s32.totalorder %s90, %s91
    %p105 = scmp.eq.s32.totalorder %s15, 3
    %p106 = por %p104, %p105
    %p108 = scmp.ne.s32.totalorder %s91, %s107
    %p109 = scmp.eq.s32.totalorder %s15, 0
    %p110 = por %p108, %p109
    %p111 = scmp.le.s32.totalorder 1, %s9
    %p112 = scmp.lt.s32.totalorder %s9, 5
    %p113 = pnand %p111, %p112
    %p114 = pneg %p113
    // Predicated region
    $region9: #{tpu_custom_call.1} parent=5 // pred_check
      _
    $region10: #{tpu_custom_call.1} parent=5 // pred_check_branch
      %116 = sbr.rel (%p113) target = $region12
    $region11: #{tpu_custom_call.1} parent=5 // pred_region
      %s117 = ssub.s32 %s9, 1
      // Predicated region
      $region13: #{tpu_custom_call.1} parent=11 // pred_check
        %p118 = pneg %p56
      $region14: #{tpu_custom_call.1} parent=11 // pred_check_branch
        %120 = sbr.rel (%p118) target = $region16
      $region15: #{tpu_custom_call.1} parent=11 // pred_region
        _
      $region16: #{tpu_custom_call.1} parent=11 // pred_fallthru
        _
      // Predicated region
      $region17: #{tpu_custom_call.1} parent=11 // pred_check
        %p121 = pneg %p77
      $region18: #{tpu_custom_call.1} parent=11 // pred_check_branch
        %123 = sbr.rel (%p121) target = $region20
      $region19: #{tpu_custom_call.1} parent=11 // pred_region
        _
      $region20: #{tpu_custom_call.1} parent=11 // pred_fallthru
        _
    $region12: #{tpu_custom_call.1} parent=5 // pred_fallthru
      _
    %p124 = scmp.lt.s32.totalorder %s9, 4
    // Predicated region
    $region21: #{tpu_custom_call.1} parent=5 // pred_check
      %p125 = pneg %p124
    $region22: #{tpu_custom_call.1} parent=5 // pred_check_branch
      %127 = sbr.rel (%p125) target = $region24
    $region23: #{tpu_custom_call.1} parent=5 // pred_region
      // Predicated region
      $region25: #{tpu_custom_call.1} parent=23 // pred_check
        %p128 = pneg %p29
      $region26: #{tpu_custom_call.1} parent=23 // pred_check_branch
        %130 = sbr.rel (%p128) target = $region28
      $region27: #{tpu_custom_call.1} parent=23 // pred_region
        %s131 = smul.u32 64, %s9
        %p132 = scmp.lt.s32.totalorder %s131, 255
        %s133 = scalar_select %p132, %s131, 255
        %s134 = smul.addr %s133, 4
        %s135 = scalar_lea.vmem %s0, %s134
        %s136 = smul.u32 64, %s9
      $region28: #{tpu_custom_call.1} parent=23 // pred_fallthru
        _
    $region24: #{tpu_custom_call.1} parent=5 // pred_fallthru
      _
    %p137 = scmp.le.s32.totalorder 1, %s9
    %p138 = scmp.lt.s32.totalorder %s9, 5
    %p139 = pnand %p137, %p138
    %p140 = pneg %p139
    // Predicated region
    $region29: #{tpu_custom_call.1} parent=5 // pred_check
      _
    $region30: #{tpu_custom_call.1} parent=5 // pred_check_branch
      %142 = sbr.rel (%p139) target = $region32
    $region31: #{tpu_custom_call.1} parent=5 // pred_region
      %s143 = ssub.s32 %s9, 1
      %s144 = smul.u32 64, %s14
      %p145 = scmp.lt.s32.totalorder %s144, 255
      %s146 = scalar_select %p145, %s144, 255
      %s147 = smul.addr %s146, 4
      %s148 = scalar_lea.vmem %s0, %s147
      %p149 = pneg %p35
      %p150 = pneg %p32
      %p151 = pneg %p56
      %p152 = pneg %p53
      %p153 = pneg %p77
      %p154 = pneg %p74
      %p155 = pneg %p103
      %p156 = pneg %p100
      %s157 = smul.u32 64, %s14
      %p158 = scmp.lt.s32.totalorder %s157, 255
      %s159 = scalar_select %p158, %s157, 255
      %s160 = smul.addr %s159, 4
      %s161 = scalar_lea.vmem %s3, %s160
      %s162 = smul.u32 64, %s14
      %p163 = scmp.lt.s32.totalorder %s162, 255
      %s164 = scalar_select %p163, %s162, 255
      %s165 = smul.addr %s164, 4
      %s166 = scalar_lea.vmem %s0, %s165
      %s167 = smul.u32 64, %s14
      %s168 = smul.u32 64, %s14
      %p169 = scmp.lt.s32.totalorder %s168, 255
      %s170 = scalar_select %p169, %s168, 255
      %s171 = smul.addr %s170, 4
      %s172 = scalar_lea.vmem %s3, %s171
      %s173 = smul.u32 64, %s14
      %v175 = vld [vmem:[%s166] sm:$0xf]
      %v176 = vld [vmem:[%s166 + $0x4] sm:$0xf]
      %v177 = vld [vmem:[%s166 + $0x8] sm:$0xf]
      %v178 = vld [vmem:[%s166 + $0xc] sm:$0xf]
      %v179 = vld [vmem:[%s166 + $0x10] sm:$0xf]
      %v180 = vld [vmem:[%s166 + $0x14] sm:$0xf]
      %v181 = vld [vmem:[%s166 + $0x18] sm:$0xf]
      %v182 = vld [vmem:[%s166 + $0x1c] sm:$0xf]
      %v183 = vld [vmem:[%s166 + $0x20] sm:$0xf]
      %v184 = vld [vmem:[%s166 + $0x24] sm:$0xf]
      %v185 = vld [vmem:[%s166 + $0x28] sm:$0xf]
      %v186 = vld [vmem:[%s166 + $0x2c] sm:$0xf]
      %v187 = vld [vmem:[%s166 + $0x30] sm:$0xf]
      %v188 = vld [vmem:[%s166 + $0x34] sm:$0xf]
      %v189 = vld [vmem:[%s166 + $0x38] sm:$0xf]
      %v190 = vld [vmem:[%s166 + $0x3c] sm:$0xf]
      %v191 = vld [vmem:[%s166 + $0x40] sm:$0xf]
      %v192 = vld [vmem:[%s166 + $0x44] sm:$0xf]
      %v193 = vld [vmem:[%s166 + $0x48] sm:$0xf]
      %v194 = vld [vmem:[%s166 + $0x4c] sm:$0xf]
      %v195 = vld [vmem:[%s166 + $0x50] sm:$0xf]
      %v196 = vld [vmem:[%s166 + $0x54] sm:$0xf]
      %v197 = vld [vmem:[%s166 + $0x58] sm:$0xf]
      %v198 = vld [vmem:[%s166 + $0x5c] sm:$0xf]
      %v199 = vld [vmem:[%s166 + $0x60] sm:$0xf]
      %v200 = vld [vmem:[%s166 + $0x64] sm:$0xf]
      %v201 = vld [vmem:[%s166 + $0x68] sm:$0xf]
      %v202 = vld [vmem:[%s166 + $0x6c] sm:$0xf]
      %v203 = vld [vmem:[%s166 + $0x70] sm:$0xf]
      %v204 = vld [vmem:[%s166 + $0x74] sm:$0xf]
      %v205 = vld [vmem:[%s166 + $0x78] sm:$0xf]
      %v206 = vld [vmem:[%s166 + $0x7c] sm:$0xf]
      %v207 = vld [vmem:[%s166 + $0x80] sm:$0xf]
      %v208 = vld [vmem:[%s166 + $0x84] sm:$0xf]
      %v209 = vld [vmem:[%s166 + $0x88] sm:$0xf]
      %v210 = vld [vmem:[%s166 + $0x8c] sm:$0xf]
      %v211 = vld [vmem:[%s166 + $0x90] sm:$0xf]
      %v212 = vld [vmem:[%s166 + $0x94] sm:$0xf]
      %v213 = vld [vmem:[%s166 + $0x98] sm:$0xf]
      %v214 = vld [vmem:[%s166 + $0x9c] sm:$0xf]
      %v215 = vld [vmem:[%s166 + $0xa0] sm:$0xf]
      %v216 = vld [vmem:[%s166 + $0xa4] sm:$0xf]
      %v217 = vld [vmem:[%s166 + $0xa8] sm:$0xf]
      %v218 = vld [vmem:[%s166 + $0xac] sm:$0xf]
      %v219 = vld [vmem:[%s166 + $0xb0] sm:$0xf]
      %v220 = vld [vmem:[%s166 + $0xb4] sm:$0xf]
      %v221 = vld [vmem:[%s166 + $0xb8] sm:$0xf]
      %v222 = vld [vmem:[%s166 + $0xbc] sm:$0xf]
      %v223 = vld [vmem:[%s166 + $0xc0] sm:$0xf]
      %v224 = vld [vmem:[%s166 + $0xc4] sm:$0xf]
      %v225 = vld [vmem:[%s166 + $0xc8] sm:$0xf]
      %v226 = vld [vmem:[%s166 + $0xcc] sm:$0xf]
      %v227 = vld [vmem:[%s166 + $0xd0] sm:$0xf]
      %v228 = vld [vmem:[%s166 + $0xd4] sm:$0xf]
      %v229 = vld [vmem:[%s166 + $0xd8] sm:$0xf]
      %v230 = vld [vmem:[%s166 + $0xdc] sm:$0xf]
      %v231 = vld [vmem:[%s166 + $0xe0] sm:$0xf]
      %v232 = vld [vmem:[%s166 + $0xe4] sm:$0xf]
      %v233 = vld [vmem:[%s166 + $0xe8] sm:$0xf]
      %v234 = vld [vmem:[%s166 + $0xec] sm:$0xf]
      %v235 = vld [vmem:[%s166 + $0xf0] sm:$0xf]
      %v236 = vld [vmem:[%s166 + $0xf4] sm:$0xf]
      %v237 = vld [vmem:[%s166 + $0xf8] sm:$0xf]
      %v238 = vld [vmem:[%s166 + $0xfc] sm:$0xf]
      %v239 = vld [vmem:[%s1] sm:$0xf]
      %v240 = vld [vmem:[%s1 + $0x4] sm:$0xf]
      %v241 = vld [vmem:[%s1 + $0x8] sm:$0xf]
      %v242 = vld [vmem:[%s1 + $0xc] sm:$0x3]
      %v243 = vld [vmem:[%s2] sm:$0x1]
      %v245 = vlaneseq
      %v246 = vshrl.u32 %v245, 7
      %v247 = vsub.s32 0, %v246
      %v248 = vrot.slane %v243, %v247
      %v314 = vunpack.c.l.b16 %v175
      %v315 = vunpack.c.l.b16 %v176
      %v316 = vunpack.c.l.b16 %v177
      %v317 = vunpack.c.l.b16 %v178
      %v318 = vunpack.c.l.b16 %v179
      %v319 = vunpack.c.l.b16 %v180
      %v320 = vunpack.c.l.b16 %v181
      %v321 = vunpack.c.l.b16 %v182
      %v322 = vunpack.c.l.b16 %v183
      %v323 = vunpack.c.l.b16 %v184
      %v324 = vunpack.c.l.b16 %v185
      %v325 = vunpack.c.l.b16 %v186
      %v326 = vunpack.c.l.b16 %v187
      %v327 = vunpack.c.l.b16 %v188
      %v328 = vunpack.c.l.b16 %v189
      %v329 = vunpack.c.l.b16 %v190
      %v330 = vunpack.c.l.b16 %v191
      %v331 = vunpack.c.l.b16 %v192
      %v332 = vunpack.c.l.b16 %v193
      %v333 = vunpack.c.l.b16 %v194
      %v334 = vunpack.c.l.b16 %v195
      %v335 = vunpack.c.l.b16 %v196
      %v336 = vunpack.c.l.b16 %v197
      %v337 = vunpack.c.l.b16 %v198
      %v338 = vunpack.c.l.b16 %v199
      %v339 = vunpack.c.l.b16 %v200
      %v340 = vunpack.c.l.b16 %v201
      %v341 = vunpack.c.l.b16 %v202
      %v342 = vunpack.c.l.b16 %v203
      %v343 = vunpack.c.l.b16 %v204
      %v344 = vunpack.c.l.b16 %v205
      %v345 = vunpack.c.l.b16 %v206
      %v346 = vunpack.c.l.b16 %v207
      %v347 = vunpack.c.l.b16 %v208
      %v348 = vunpack.c.l.b16 %v209
      %v349 = vunpack.c.l.b16 %v210
      %v350 = vunpack.c.l.b16 %v211
      %v351 = vunpack.c.l.b16 %v212
      %v352 = vunpack.c.l.b16 %v213
      %v353 = vunpack.c.l.b16 %v214
      %v354 = vunpack.c.l.b16 %v215
      %v355 = vunpack.c.l.b16 %v216
      %v356 = vunpack.c.l.b16 %v217
      %v357 = vunpack.c.l.b16 %v218
      %v358 = vunpack.c.l.b16 %v219
      %v359 = vunpack.c.l.b16 %v220
      %v360 = vunpack.c.l.b16 %v221
      %v361 = vunpack.c.l.b16 %v222
      %v362 = vunpack.c.l.b16 %v223
      %v363 = vunpack.c.l.b16 %v224
      %v364 = vunpack.c.l.b16 %v225
      %v365 = vunpack.c.l.b16 %v226
      %v366 = vunpack.c.l.b16 %v227
      %v367 = vunpack.c.l.b16 %v228
      %v368 = vunpack.c.l.b16 %v229
      %v369 = vunpack.c.l.b16 %v230
      %v370 = vunpack.c.l.b16 %v231
      %v371 = vunpack.c.l.b16 %v232
      %v372 = vunpack.c.l.b16 %v233
      %v373 = vunpack.c.l.b16 %v234
      %v374 = vunpack.c.l.b16 %v235
      %v375 = vunpack.c.l.b16 %v236
      %v376 = vunpack.c.l.b16 %v237
      %v377 = vunpack.c.l.b16 %v238
      %v378 = vpack.c.b16 %v315, %v314
      %v379 = vpack.c.b16 %v317, %v316
      %v380 = vpack.c.b16 %v319, %v318
      %v381 = vpack.c.b16 %v321, %v320
      %v382 = vpack.c.b16 %v323, %v322
      %v383 = vpack.c.b16 %v325, %v324
      %v384 = vpack.c.b16 %v327, %v326
      %v385 = vpack.c.b16 %v329, %v328
      %v386 = vpack.c.b16 %v331, %v330
      %v387 = vpack.c.b16 %v333, %v332
      %v388 = vpack.c.b16 %v335, %v334
      %v389 = vpack.c.b16 %v337, %v336
      %v390 = vpack.c.b16 %v339, %v338
      %v391 = vpack.c.b16 %v341, %v340
      %v392 = vpack.c.b16 %v343, %v342
      %v393 = vpack.c.b16 %v345, %v344
      %v394 = vpack.c.b16 %v347, %v346
      %v395 = vpack.c.b16 %v349, %v348
      %v396 = vpack.c.b16 %v351, %v350
      %v397 = vpack.c.b16 %v353, %v352
      %v398 = vpack.c.b16 %v355, %v354
      %v399 = vpack.c.b16 %v357, %v356
      %v400 = vpack.c.b16 %v359, %v358
      %v401 = vpack.c.b16 %v361, %v360
      %v402 = vpack.c.b16 %v363, %v362
      %v403 = vpack.c.b16 %v365, %v364
      %v404 = vpack.c.b16 %v367, %v366
      %v405 = vpack.c.b16 %v369, %v368
      %v406 = vpack.c.b16 %v371, %v370
      %v407 = vpack.c.b16 %v373, %v372
      %v408 = vpack.c.b16 %v375, %v374
      %v409 = vpack.c.b16 %v377, %v376
      %v414 = vunpack.c.l.b16 %v239
      %v415 = vunpack.c.l.b16 %v240
      %v416 = vunpack.c.l.b16 %v241
      %v417 = vunpack.c.l.b16 %v242
      %v418 = vpack.c.b16 %v415, %v414
      %v419 = vpack.c.b16 %v417, %v416
      %vm421 = vcmask 220160
      %v423 = vsel %vm421, %v378, 0
      %v426 = vsel %vm421, %v379, 0
      %v429 = vsel %vm421, %v380, 0
      %v432 = vsel %vm421, %v381, 0
      %v435 = vsel %vm421, %v382, 0
      %v438 = vsel %vm421, %v383, 0
      %v441 = vsel %vm421, %v384, 0
      %v444 = vsel %vm421, %v385, 0
      %v447 = vsel %vm421, %v386, 0
      %v450 = vsel %vm421, %v387, 0
      %v453 = vsel %vm421, %v388, 0
      %v456 = vsel %vm421, %v389, 0
      %v459 = vsel %vm421, %v390, 0
      %v462 = vsel %vm421, %v391, 0
      %v465 = vsel %vm421, %v392, 0
      %v468 = vsel %vm421, %v393, 0
      %v471 = vsel %vm421, %v394, 0
      %v474 = vsel %vm421, %v395, 0
      %v477 = vsel %vm421, %v396, 0
      %v480 = vsel %vm421, %v397, 0
      %v483 = vsel %vm421, %v398, 0
      %v486 = vsel %vm421, %v399, 0
      %v489 = vsel %vm421, %v400, 0
      %v492 = vsel %vm421, %v401, 0
      %v495 = vsel %vm421, %v402, 0
      %v498 = vsel %vm421, %v403, 0
      %v501 = vsel %vm421, %v404, 0
      %v504 = vsel %vm421, %v405, 0
      %v507 = vsel %vm421, %v406, 0
      %v510 = vsel %vm421, %v407, 0
      %v513 = vsel %vm421, %v408, 0
      %v516 = vsel %vm421, %v409, 0
      %vm518 = vcmask 1044480
      %vm519 = vcmask 1045504
      %v520 = vsel %vm518, 4294967295, 65535
      %v521 = vsel %vm519, %v520, 0
      %v523 = vand.u32 %v419, %v521
      %525 = vmatprep.subr.bf16.mxu0 0
      %526 = vmatpush1.bf16.msra.mxu0 0
      %527 = vmatprep.subr.bf16.mxu0 0
      %528 = vmatpush1.bf16.msra.mxu0 0
      %529 = vmatprep.subr.bf16.mxu0 0
      %530 = vmatpush1.bf16.msra.mxu0 0
      %531 = vmatprep.subr.bf16.mxu0 0
      %532 = vmatpush1.bf16.msra.mxu0 0
      %533 = vmatprep.subr.bf16.mxu0 0
      %534 = vmatpush1.bf16.msra.mxu0 0
      %535 = vmatprep.subr.bf16.mxu0 0
      %536 = vmatpush1.bf16.msra.mxu0 0
      %537 = vmatprep.subr.bf16.mxu0 0
      %538 = vmatpush1.bf16.msra.mxu0 %v523
      %539 = vmatprep.subr.bf16.mxu0 0
      %540 = vmatpush1.bf16.msra.mxu0 %v418
      %541 = vmatprep.subr.bf16.mxu0 0
      %542 = vmatpush2.bf16.msra.mxu0 0
      %543 = vmatprep.subr.bf16.mxu0 0
      %544 = vmatpush2.bf16.msra.mxu0 0
      %545 = vmatprep.subr.bf16.mxu0 0
      %546 = vmatpush2.bf16.msra.mxu0 0
      %547 = vmatprep.subr.bf16.mxu0 0
      %548 = vmatpush2.bf16.msra.mxu0 0
      %549 = vmatprep.subr.bf16.mxu0 0
      %550 = vmatpush2.bf16.msra.mxu0 0
      %551 = vmatprep.subr.bf16.mxu0 0
      %552 = vmatpush2.bf16.msra.mxu0 0
      %553 = vmatprep.subr.bf16.mxu0 0
      %554 = vmatpush2.bf16.msra.mxu0 0
      %555 = vmatprep.subr.bf16.mxu0 0
      %556 = vmatpush2.bf16.msra.mxu0 0
      %557 = vmatprep.mubr.bf16.mxu0 0
      %558 = vmatmul.mubr.bf16.gmra.mxu0 %v423
      %v559 = vpop.f32.mrf.mxu0
      %v560 = vadd.f32 %v248, %v559
      %v561 = vpop.f32.mrf.mxu0
      %v562 = vpop.f32.mrf.mxu0
      %v563 = vadd.f32 %v248, %v562
      %v564 = vpop.f32.mrf.mxu0
      %565 = vmatprep.mubr.bf16.mxu0 0
      %566 = vmatmul.mubr.bf16.gmra.mxu0 %v426
      %v567 = vpop.f32.mrf.mxu0
      %v568 = vadd.f32 %v248, %v567
      %v569 = vpop.f32.mrf.mxu0
      %v570 = vpop.f32.mrf.mxu0
      %v571 = vadd.f32 %v248, %v570
      %v572 = vpop.f32.mrf.mxu0
      %573 = vmatprep.mubr.bf16.mxu0 0
      %574 = vmatmul.mubr.bf16.gmra.mxu0 %v429
      %v575 = vpop.f32.mrf.mxu0
      %v576 = vadd.f32 %v248, %v575
      %v577 = vpop.f32.mrf.mxu0
      %v578 = vpop.f32.mrf.mxu0
      %v579 = vadd.f32 %v248, %v578
      %v580 = vpop.f32.mrf.mxu0
      %581 = vmatprep.mubr.bf16.mxu0 0
      %582 = vmatmul.mubr.bf16.gmra.mxu0 %v432
      %v583 = vpop.f32.mrf.mxu0
      %v584 = vadd.f32 %v248, %v583
      %v585 = vpop.f32.mrf.mxu0
      %v586 = vpop.f32.mrf.mxu0
      %v587 = vadd.f32 %v248, %v586
      %v588 = vpop.f32.mrf.mxu0
      %589 = vmatprep.mubr.bf16.mxu0 0
      %590 = vmatmul.mubr.bf16.gmra.mxu0 %v435
      %v591 = vpop.f32.mrf.mxu0
      %v592 = vadd.f32 %v248, %v591
      %v593 = vpop.f32.mrf.mxu0
      %v594 = vpop.f32.mrf.mxu0
      %v595 = vadd.f32 %v248, %v594
      %v596 = vpop.f32.mrf.mxu0
      %597 = vmatprep.mubr.bf16.mxu0 0
      %598 = vmatmul.mubr.bf16.gmra.mxu0 %v438
      %v599 = vpop.f32.mrf.mxu0
      %v600 = vadd.f32 %v248, %v599
      %v601 = vpop.f32.mrf.mxu0
      %v602 = vpop.f32.mrf.mxu0
      %v603 = vadd.f32 %v248, %v602
      %v604 = vpop.f32.mrf.mxu0
      %605 = vmatprep.mubr.bf16.mxu0 0
      %606 = vmatmul.mubr.bf16.gmra.mxu0 %v441
      %v607 = vpop.f32.mrf.mxu0
      %v608 = vadd.f32 %v248, %v607
      %v609 = vpop.f32.mrf.mxu0
      %v610 = vpop.f32.mrf.mxu0
      %v611 = vadd.f32 %v248, %v610
      %v612 = vpop.f32.mrf.mxu0
      %613 = vmatprep.mubr.bf16.mxu0 0
      %614 = vmatmul.mubr.bf16.gmra.mxu0 %v444
      %v615 = vpop.f32.mrf.mxu0
      %v616 = vadd.f32 %v248, %v615
      %v617 = vpop.f32.mrf.mxu0
      %v618 = vpop.f32.mrf.mxu0
      %v619 = vadd.f32 %v248, %v618
      %v620 = vpop.f32.mrf.mxu0
      %621 = vmatprep.mubr.bf16.mxu0 0
      %622 = vmatmul.mubr.bf16.gmra.mxu0 %v447
      %v623 = vpop.f32.mrf.mxu0
      %v624 = vadd.f32 %v248, %v623
      %v625 = vpop.f32.mrf.mxu0
      %v626 = vpop.f32.mrf.mxu0
      %v627 = vadd.f32 %v248, %v626
      %v628 = vpop.f32.mrf.mxu0
      %629 = vmatprep.mubr.bf16.mxu0 0
      %630 = vmatmul.mubr.bf16.gmra.mxu0 %v450
      %v631 = vpop.f32.mrf.mxu0
      %v632 = vadd.f32 %v248, %v631
      %v633 = vpop.f32.mrf.mxu0
      %v634 = vpop.f32.mrf.mxu0
      %v635 = vadd.f32 %v248, %v634
      %v636 = vpop.f32.mrf.mxu0
      %637 = vmatprep.mubr.bf16.mxu0 0
      %638 = vmatmul.mubr.bf16.gmra.mxu0 %v453
      %v639 = vpop.f32.mrf.mxu0
      %v640 = vadd.f32 %v248, %v639
      %v641 = vpop.f32.mrf.mxu0
      %v642 = vpop.f32.mrf.mxu0
      %v643 = vadd.f32 %v248, %v642
      %v644 = vpop.f32.mrf.mxu0
      %645 = vmatprep.mubr.bf16.mxu0 0
      %646 = vmatmul.mubr.bf16.gmra.mxu0 %v456
      %v647 = vpop.f32.mrf.mxu0
      %v648 = vadd.f32 %v248, %v647
      %v649 = vpop.f32.mrf.mxu0
      %v650 = vpop.f32.mrf.mxu0
      %v651 = vadd.f32 %v248, %v650
      %v652 = vpop.f32.mrf.mxu0
      %653 = vmatprep.mubr.bf16.mxu0 0
      %654 = vmatmul.mubr.bf16.gmra.mxu0 %v459
      %v655 = vpop.f32.mrf.mxu0
      %v656 = vadd.f32 %v248, %v655
      %v657 = vpop.f32.mrf.mxu0
      %v658 = vpop.f32.mrf.mxu0
      %v659 = vadd.f32 %v248, %v658
      %v660 = vpop.f32.mrf.mxu0
      %661 = vmatprep.mubr.bf16.mxu0 0
      %662 = vmatmul.mubr.bf16.gmra.mxu0 %v462
      %v663 = vpop.f32.mrf.mxu0
      %v664 = vadd.f32 %v248, %v663
      %v665 = vpop.f32.mrf.mxu0
      %v666 = vpop.f32.mrf.mxu0
      %v667 = vadd.f32 %v248, %v666
      %v668 = vpop.f32.mrf.mxu0
      %669 = vmatprep.mubr.bf16.mxu0 0
      %670 = vmatmul.mubr.bf16.gmra.mxu0 %v465
      %v671 = vpop.f32.mrf.mxu0
      %v672 = vadd.f32 %v248, %v671
      %v673 = vpop.f32.mrf.mxu0
      %v674 = vpop.f32.mrf.mxu0
      %v675 = vadd.f32 %v248, %v674
      %v676 = vpop.f32.mrf.mxu0
      %677 = vmatprep.mubr.bf16.mxu0 0
      %678 = vmatmul.mubr.bf16.gmra.mxu0 %v468
      %v679 = vpop.f32.mrf.mxu0
      %v680 = vadd.f32 %v248, %v679
      %v681 = vpop.f32.mrf.mxu0
      %v682 = vpop.f32.mrf.mxu0
      %v683 = vadd.f32 %v248, %v682
      %v684 = vpop.f32.mrf.mxu0
      %685 = vmatprep.mubr.bf16.mxu0 0
      %686 = vmatmul.mubr.bf16.gmra.mxu0 %v471
      %v687 = vpop.f32.mrf.mxu0
      %v688 = vadd.f32 %v248, %v687
      %v689 = vpop.f32.mrf.mxu0
      %v690 = vpop.f32.mrf.mxu0
      %v691 = vadd.f32 %v248, %v690
      %v692 = vpop.f32.mrf.mxu0
      %693 = vmatprep.mubr.bf16.mxu0 0
      %694 = vmatmul.mubr.bf16.gmra.mxu0 %v474
      %v695 = vpop.f32.mrf.mxu0
      %v696 = vadd.f32 %v248, %v695
      %v697 = vpop.f32.mrf.mxu0
      %v698 = vpop.f32.mrf.mxu0
      %v699 = vadd.f32 %v248, %v698
      %v700 = vpop.f32.mrf.mxu0
      %701 = vmatprep.mubr.bf16.mxu0 0
      %702 = vmatmul.mubr.bf16.gmra.mxu0 %v477
      %v703 = vpop.f32.mrf.mxu0
      %v704 = vadd.f32 %v248, %v703
      %v705 = vpop.f32.mrf.mxu0
      %v706 = vpop.f32.mrf.mxu0
      %v707 = vadd.f32 %v248, %v706
      %v708 = vpop.f32.mrf.mxu0
      %709 = vmatprep.mubr.bf16.mxu0 0
      %710 = vmatmul.mubr.bf16.gmra.mxu0 %v480
      %v711 = vpop.f32.mrf.mxu0
      %v712 = vadd.f32 %v248, %v711
      %v713 = vpop.f32.mrf.mxu0
      %v714 = vpop.f32.mrf.mxu0
      %v715 = vadd.f32 %v248, %v714
      %v716 = vpop.f32.mrf.mxu0
      %717 = vmatprep.mubr.bf16.mxu0 0
      %718 = vmatmul.mubr.bf16.gmra.mxu0 %v483
      %v719 = vpop.f32.mrf.mxu0
      %v720 = vadd.f32 %v248, %v719
      %v721 = vpop.f32.mrf.mxu0
      %v722 = vpop.f32.mrf.mxu0
      %v723 = vadd.f32 %v248, %v722
      %v724 = vpop.f32.mrf.mxu0
      %725 = vmatprep.mubr.bf16.mxu0 0
      %726 = vmatmul.mubr.bf16.gmra.mxu0 %v486
      %v727 = vpop.f32.mrf.mxu0
      %v728 = vadd.f32 %v248, %v727
      %v729 = vpop.f32.mrf.mxu0
      %v730 = vpop.f32.mrf.mxu0
      %v731 = vadd.f32 %v248, %v730
      %v732 = vpop.f32.mrf.mxu0
      %733 = vmatprep.mubr.bf16.mxu0 0
      %734 = vmatmul.mubr.bf16.gmra.mxu0 %v489
      %v735 = vpop.f32.mrf.mxu0
      %v736 = vadd.f32 %v248, %v735
      %v737 = vpop.f32.mrf.mxu0
      %v738 = vpop.f32.mrf.mxu0
      %v739 = vadd.f32 %v248, %v738
      %v740 = vpop.f32.mrf.mxu0
      %741 = vmatprep.mubr.bf16.mxu0 0
      %742 = vmatmul.mubr.bf16.gmra.mxu0 %v492
      %v743 = vpop.f32.mrf.mxu0
      %v744 = vadd.f32 %v248, %v743
      %v745 = vpop.f32.mrf.mxu0
      %v746 = vpop.f32.mrf.mxu0
      %v747 = vadd.f32 %v248, %v746
      %v748 = vpop.f32.mrf.mxu0
      %749 = vmatprep.mubr.bf16.mxu0 0
      %750 = vmatmul.mubr.bf16.gmra.mxu0 %v495
      %v751 = vpop.f32.mrf.mxu0
      %v752 = vadd.f32 %v248, %v751
      %v753 = vpop.f32.mrf.mxu0
      %v754 = vpop.f32.mrf.mxu0
      %v755 = vadd.f32 %v248, %v754
      %v756 = vpop.f32.mrf.mxu0
      %757 = vmatprep.mubr.bf16.mxu0 0
      %758 = vmatmul.mubr.bf16.gmra.mxu0 %v498
      %v759 = vpop.f32.mrf.mxu0
      %v760 = vadd.f32 %v248, %v759
      %v761 = vpop.f32.mrf.mxu0
      %v762 = vpop.f32.mrf.mxu0
      %v763 = vadd.f32 %v248, %v762
      %v764 = vpop.f32.mrf.mxu0
      %765 = vmatprep.mubr.bf16.mxu0 0
      %766 = vmatmul.mubr.bf16.gmra.mxu0 %v501
      %v767 = vpop.f32.mrf.mxu0
      %v768 = vadd.f32 %v248, %v767
      %v769 = vpop.f32.mrf.mxu0
      %v770 = vpop.f32.mrf.mxu0
      %v771 = vadd.f32 %v248, %v770
      %v772 = vpop.f32.mrf.mxu0
      %773 = vmatprep.mubr.bf16.mxu0 0
      %774 = vmatmul.mubr.bf16.gmra.mxu0 %v504
      %v775 = vpop.f32.mrf.mxu0
      %v776 = vadd.f32 %v248, %v775
      %v777 = vpop.f32.mrf.mxu0
      %v778 = vpop.f32.mrf.mxu0
      %v779 = vadd.f32 %v248, %v778
      %v780 = vpop.f32.mrf.mxu0
      %781 = vmatprep.mubr.bf16.mxu0 0
      %782 = vmatmul.mubr.bf16.gmra.mxu0 %v507
      %v783 = vpop.f32.mrf.mxu0
      %v784 = vadd.f32 %v248, %v783
      %v785 = vpop.f32.mrf.mxu0
      %v786 = vpop.f32.mrf.mxu0
      %v787 = vadd.f32 %v248, %v786
      %v788 = vpop.f32.mrf.mxu0
      %789 = vmatprep.mubr.bf16.mxu0 0
      %790 = vmatmul.mubr.bf16.gmra.mxu0 %v510
      %v791 = vpop.f32.mrf.mxu0
      %v792 = vadd.f32 %v248, %v791
      %v793 = vpop.f32.mrf.mxu0
      %v794 = vpop.f32.mrf.mxu0
      %v795 = vadd.f32 %v248, %v794
      %v796 = vpop.f32.mrf.mxu0
      %797 = vmatprep.mubr.bf16.mxu0 0
      %798 = vmatmul.mubr.bf16.gmra.mxu0 %v513
      %v799 = vpop.f32.mrf.mxu0
      %v800 = vadd.f32 %v248, %v799
      %v801 = vpop.f32.mrf.mxu0
      %v802 = vpop.f32.mrf.mxu0
      %v803 = vadd.f32 %v248, %v802
      %v804 = vpop.f32.mrf.mxu0
      %805 = vmatprep.mubr.bf16.mxu0 0
      %806 = vmatmul.mubr.bf16.gmra.mxu0 %v516
      %v807 = vpop.f32.mrf.mxu0
      %v808 = vadd.f32 %v248, %v807
      %v809 = vpop.f32.mrf.mxu0
      %v810 = vpop.f32.mrf.mxu0
      %v811 = vadd.f32 %v248, %v810
      %v812 = vpop.f32.mrf.mxu0
      %813 = vdwg.mxu0
      %v814 = vpack.c.bf16 %v563, %v560
      %v815 = vpack.c.bf16 %v571, %v568
      %v816 = vpack.c.bf16 %v579, %v576
      %v817 = vpack.c.bf16 %v587, %v584
      %v818 = vpack.c.bf16 %v595, %v592
      %v819 = vpack.c.bf16 %v603, %v600
      %v820 = vpack.c.bf16 %v611, %v608
      %v821 = vpack.c.bf16 %v619, %v616
      %v822 = vpack.c.bf16 %v627, %v624
      %v823 = vpack.c.bf16 %v635, %v632
      %v824 = vpack.c.bf16 %v643, %v640
      %v825 = vpack.c.bf16 %v651, %v648
      %v826 = vpack.c.bf16 %v659, %v656
      %v827 = vpack.c.bf16 %v667, %v664
      %v828 = vpack.c.bf16 %v675, %v672
      %v829 = vpack.c.bf16 %v683, %v680
      %v830 = vpack.c.bf16 %v691, %v688
      %v831 = vpack.c.bf16 %v699, %v696
      %v832 = vpack.c.bf16 %v707, %v704
      %v833 = vpack.c.bf16 %v715, %v712
      %v834 = vpack.c.bf16 %v723, %v720
      %v835 = vpack.c.bf16 %v731, %v728
      %v836 = vpack.c.bf16 %v739, %v736
      %v837 = vpack.c.bf16 %v747, %v744
      %v838 = vpack.c.bf16 %v755, %v752
      %v839 = vpack.c.bf16 %v763, %v760
      %v840 = vpack.c.bf16 %v771, %v768
      %v841 = vpack.c.bf16 %v779, %v776
      %v842 = vpack.c.bf16 %v787, %v784
      %v843 = vpack.c.bf16 %v795, %v792
      %v844 = vpack.c.bf16 %v803, %v800
      %v845 = vpack.c.bf16 %v811, %v808
      %v878 = vunpack.c.l.b16 %v814
      %v879 = vunpack.c.h.b16 %v814
      %v880 = vunpack.c.l.b16 %v815
      %v881 = vunpack.c.h.b16 %v815
      %v882 = vunpack.c.l.b16 %v816
      %v883 = vunpack.c.h.b16 %v816
      %v884 = vunpack.c.l.b16 %v817
      %v885 = vunpack.c.h.b16 %v817
      %v886 = vunpack.c.l.b16 %v818
      %v887 = vunpack.c.h.b16 %v818
      %v888 = vunpack.c.l.b16 %v819
      %v889 = vunpack.c.h.b16 %v819
      %v890 = vunpack.c.l.b16 %v820
      %v891 = vunpack.c.h.b16 %v820
      %v892 = vunpack.c.l.b16 %v821
      %v893 = vunpack.c.h.b16 %v821
      %v894 = vunpack.c.l.b16 %v822
      %v895 = vunpack.c.h.b16 %v822
      %v896 = vunpack.c.l.b16 %v823
      %v897 = vunpack.c.h.b16 %v823
      %v898 = vunpack.c.l.b16 %v824
      %v899 = vunpack.c.h.b16 %v824
      %v900 = vunpack.c.l.b16 %v825
      %v901 = vunpack.c.h.b16 %v825
      %v902 = vunpack.c.l.b16 %v826
      %v903 = vunpack.c.h.b16 %v826
      %v904 = vunpack.c.l.b16 %v827
      %v905 = vunpack.c.h.b16 %v827
      %v906 = vunpack.c.l.b16 %v828
      %v907 = vunpack.c.h.b16 %v828
      %v908 = vunpack.c.l.b16 %v829
      %v909 = vunpack.c.h.b16 %v829
      %v910 = vunpack.c.l.b16 %v830
      %v911 = vunpack.c.h.b16 %v830
      %v912 = vunpack.c.l.b16 %v831
      %v913 = vunpack.c.h.b16 %v831
      %v914 = vunpack.c.l.b16 %v832
      %v915 = vunpack.c.h.b16 %v832
      %v916 = vunpack.c.l.b16 %v833
      %v917 = vunpack.c.h.b16 %v833
      %v918 = vunpack.c.l.b16 %v834
      %v919 = vunpack.c.h.b16 %v834
      %v920 = vunpack.c.l.b16 %v835
      %v921 = vunpack.c.h.b16 %v835
      %v922 = vunpack.c.l.b16 %v836
      %v923 = vunpack.c.h.b16 %v836
      %v924 = vunpack.c.l.b16 %v837
      %v925 = vunpack.c.h.b16 %v837
      %v926 = vunpack.c.l.b16 %v838
      %v927 = vunpack.c.h.b16 %v838
      %v928 = vunpack.c.l.b16 %v839
      %v929 = vunpack.c.h.b16 %v839
      %v930 = vunpack.c.l.b16 %v840
      %v931 = vunpack.c.h.b16 %v840
      %v932 = vunpack.c.l.b16 %v841
      %v933 = vunpack.c.h.b16 %v841
      %v934 = vunpack.c.l.b16 %v842
      %v935 = vunpack.c.h.b16 %v842
      %v936 = vunpack.c.l.b16 %v843
      %v937 = vunpack.c.h.b16 %v843
      %v938 = vunpack.c.l.b16 %v844
      %v939 = vunpack.c.h.b16 %v844
      %v940 = vunpack.c.l.b16 %v845
      %v941 = vunpack.c.h.b16 %v845
      %v942 = vpack.c.b16 %v878, %v878
      %v943 = vpack.c.b16 %v879, %v879
      %v944 = vpack.c.b16 %v880, %v880
      %v945 = vpack.c.b16 %v881, %v881
      %v946 = vpack.c.b16 %v882, %v882
      %v947 = vpack.c.b16 %v883, %v883
      %v948 = vpack.c.b16 %v884, %v884
      %v949 = vpack.c.b16 %v885, %v885
      %v950 = vpack.c.b16 %v886, %v886
      %v951 = vpack.c.b16 %v887, %v887
      %v952 = vpack.c.b16 %v888, %v888
      %v953 = vpack.c.b16 %v889, %v889
      %v954 = vpack.c.b16 %v890, %v890
      %v955 = vpack.c.b16 %v891, %v891
      %v956 = vpack.c.b16 %v892, %v892
      %v957 = vpack.c.b16 %v893, %v893
      %v958 = vpack.c.b16 %v894, %v894
      %v959 = vpack.c.b16 %v895, %v895
      %v960 = vpack.c.b16 %v896, %v896
      %v961 = vpack.c.b16 %v897, %v897
      %v962 = vpack.c.b16 %v898, %v898
      %v963 = vpack.c.b16 %v899, %v899
      %v964 = vpack.c.b16 %v900, %v900
      %v965 = vpack.c.b16 %v901, %v901
      %v966 = vpack.c.b16 %v902, %v902
      %v967 = vpack.c.b16 %v903, %v903
      %v968 = vpack.c.b16 %v904, %v904
      %v969 = vpack.c.b16 %v905, %v905
      %v970 = vpack.c.b16 %v906, %v906
      %v971 = vpack.c.b16 %v907, %v907
      %v972 = vpack.c.b16 %v908, %v908
      %v973 = vpack.c.b16 %v909, %v909
      %v974 = vpack.c.b16 %v910, %v910
      %v975 = vpack.c.b16 %v911, %v911
      %v976 = vpack.c.b16 %v912, %v912
      %v977 = vpack.c.b16 %v913, %v913
      %v978 = vpack.c.b16 %v914, %v914
      %v979 = vpack.c.b16 %v915, %v915
      %v980 = vpack.c.b16 %v916, %v916
      %v981 = vpack.c.b16 %v917, %v917
      %v982 = vpack.c.b16 %v918, %v918
      %v983 = vpack.c.b16 %v919, %v919
      %v984 = vpack.c.b16 %v920, %v920
      %v985 = vpack.c.b16 %v921, %v921
      %v986 = vpack.c.b16 %v922, %v922
      %v987 = vpack.c.b16 %v923, %v923
      %v988 = vpack.c.b16 %v924, %v924
      %v989 = vpack.c.b16 %v925, %v925
      %v990 = vpack.c.b16 %v926, %v926
      %v991 = vpack.c.b16 %v927, %v927
      %v992 = vpack.c.b16 %v928, %v928
      %v993 = vpack.c.b16 %v929, %v929
      %v994 = vpack.c.b16 %v930, %v930
      %v995 = vpack.c.b16 %v931, %v931
      %v996 = vpack.c.b16 %v932, %v932
      %v997 = vpack.c.b16 %v933, %v933
      %v998 = vpack.c.b16 %v934, %v934
      %v999 = vpack.c.b16 %v935, %v935
      %v1000 = vpack.c.b16 %v936, %v936
      %v1001 = vpack.c.b16 %v937, %v937
      %v1002 = vpack.c.b16 %v938, %v938
      %v1003 = vpack.c.b16 %v939, %v939
      %v1004 = vpack.c.b16 %v940, %v940
      %v1005 = vpack.c.b16 %v941, %v941
      %vm1070 = vcmask 60416
      %1071 = vst.msk [vmem:[%s172] sm:$0xf] %vm1070, %v942
      %1072 = vst.msk [vmem:[%s172 + $0x4] sm:$0xf] %vm1070, %v943
      %1073 = vst.msk [vmem:[%s172 + $0x8] sm:$0xf] %vm1070, %v944
      %1074 = vst.msk [vmem:[%s172 + $0xc] sm:$0xf] %vm1070, %v945
      %1075 = vst.msk [vmem:[%s172 + $0x10] sm:$0xf] %vm1070, %v946
      %1076 = vst.msk [vmem:[%s172 + $0x14] sm:$0xf] %vm1070, %v947
      %1077 = vst.msk [vmem:[%s172 + $0x18] sm:$0xf] %vm1070, %v948
      %1078 = vst.msk [vmem:[%s172 + $0x1c] sm:$0xf] %vm1070, %v949
      %1079 = vst.msk [vmem:[%s172 + $0x20] sm:$0xf] %vm1070, %v950
      %1080 = vst.msk [vmem:[%s172 + $0x24] sm:$0xf] %vm1070, %v951
      %1081 = vst.msk [vmem:[%s172 + $0x28] sm:$0xf] %vm1070, %v952
      %1082 = vst.msk [vmem:[%s172 + $0x2c] sm:$0xf] %vm1070, %v953
      %1083 = vst.msk [vmem:[%s172 + $0x30] sm:$0xf] %vm1070, %v954
      %1084 = vst.msk [vmem:[%s172 + $0x34] sm:$0xf] %vm1070, %v955
      %1085 = vst.msk [vmem:[%s172 + $0x38] sm:$0xf] %vm1070, %v956
      %1086 = vst.msk [vmem:[%s172 + $0x3c] sm:$0xf] %vm1070, %v957
      %1087 = vst.msk [vmem:[%s172 + $0x40] sm:$0xf] %vm1070, %v958
      %1088 = vst.msk [vmem:[%s172 + $0x44] sm:$0xf] %vm1070, %v959
      %1089 = vst.msk [vmem:[%s172 + $0x48] sm:$0xf] %vm1070, %v960
      %1090 = vst.msk [vmem:[%s172 + $0x4c] sm:$0xf] %vm1070, %v961
      %1091 = vst.msk [vmem:[%s172 + $0x50] sm:$0xf] %vm1070, %v962
      %1092 = vst.msk [vmem:[%s172 + $0x54] sm:$0xf] %vm1070, %v963
      %1093 = vst.msk [vmem:[%s172 + $0x58] sm:$0xf] %vm1070, %v964
      %1094 = vst.msk [vmem:[%s172 + $0x5c] sm:$0xf] %vm1070, %v965
      %1095 = vst.msk [vmem:[%s172 + $0x60] sm:$0xf] %vm1070, %v966
      %1096 = vst.msk [vmem:[%s172 + $0x64] sm:$0xf] %vm1070, %v967
      %1097 = vst.msk [vmem:[%s172 + $0x68] sm:$0xf] %vm1070, %v968
      %1098 = vst.msk [vmem:[%s172 + $0x6c] sm:$0xf] %vm1070, %v969
      %1099 = vst.msk [vmem:[%s172 + $0x70] sm:$0xf] %vm1070, %v970
      %1100 = vst.msk [vmem:[%s172 + $0x74] sm:$0xf] %vm1070, %v971
      %1101 = vst.msk [vmem:[%s172 + $0x78] sm:$0xf] %vm1070, %v972
      %1102 = vst.msk [vmem:[%s172 + $0x7c] sm:$0xf] %vm1070, %v973
      %1103 = vst.msk [vmem:[%s172 + $0x80] sm:$0xf] %vm1070, %v974
      %1104 = vst.msk [vmem:[%s172 + $0x84] sm:$0xf] %vm1070, %v975
      %1105 = vst.msk [vmem:[%s172 + $0x88] sm:$0xf] %vm1070, %v976
      %1106 = vst.msk [vmem:[%s172 + $0x8c] sm:$0xf] %vm1070, %v977
      %1107 = vst.msk [vmem:[%s172 + $0x90] sm:$0xf] %vm1070, %v978
      %1108 = vst.msk [vmem:[%s172 + $0x94] sm:$0xf] %vm1070, %v979
      %1109 = vst.msk [vmem:[%s172 + $0x98] sm:$0xf] %vm1070, %v980
      %1110 = vst.msk [vmem:[%s172 + $0x9c] sm:$0xf] %vm1070, %v981
      %1111 = vst.msk [vmem:[%s172 + $0xa0] sm:$0xf] %vm1070, %v982
      %1112 = vst.msk [vmem:[%s172 + $0xa4] sm:$0xf] %vm1070, %v983
      %1113 = vst.msk [vmem:[%s172 + $0xa8] sm:$0xf] %vm1070, %v984
      %1114 = vst.msk [vmem:[%s172 + $0xac] sm:$0xf] %vm1070, %v985
      %1115 = vst.msk [vmem:[%s172 + $0xb0] sm:$0xf] %vm1070, %v986
      %1116 = vst.msk [vmem:[%s172 + $0xb4] sm:$0xf] %vm1070, %v987
      %1117 = vst.msk [vmem:[%s172 + $0xb8] sm:$0xf] %vm1070, %v988
      %1118 = vst.msk [vmem:[%s172 + $0xbc] sm:$0xf] %vm1070, %v989
      %1119 = vst.msk [vmem:[%s172 + $0xc0] sm:$0xf] %vm1070, %v990
      %1120 = vst.msk [vmem:[%s172 + $0xc4] sm:$0xf] %vm1070, %v991
      %1121 = vst.msk [vmem:[%s172 + $0xc8] sm:$0xf] %vm1070, %v992
      %1122 = vst.msk [vmem:[%s172 + $0xcc] sm:$0xf] %vm1070, %v993
      %1123 = vst.msk [vmem:[%s172 + $0xd0] sm:$0xf] %vm1070, %v994
      %1124 = vst.msk [vmem:[%s172 + $0xd4] sm:$0xf] %vm1070, %v995
      %1125 = vst.msk [vmem:[%s172 + $0xd8] sm:$0xf] %vm1070, %v996
      %1126 = vst.msk [vmem:[%s172 + $0xdc] sm:$0xf] %vm1070, %v997
      %1127 = vst.msk [vmem:[%s172 + $0xe0] sm:$0xf] %vm1070, %v998
      %1128 = vst.msk [vmem:[%s172 + $0xe4] sm:$0xf] %vm1070, %v999
      %1129 = vst.msk [vmem:[%s172 + $0xe8] sm:$0xf] %vm1070, %v1000
      %1130 = vst.msk [vmem:[%s172 + $0xec] sm:$0xf] %vm1070, %v1001
      %1131 = vst.msk [vmem:[%s172 + $0xf0] sm:$0xf] %vm1070, %v1002
      %1132 = vst.msk [vmem:[%s172 + $0xf4] sm:$0xf] %vm1070, %v1003
      %1133 = vst.msk [vmem:[%s172 + $0xf8] sm:$0xf] %vm1070, %v1004
      %1134 = vst.msk [vmem:[%s172 + $0xfc] sm:$0xf] %vm1070, %v1005
      %s1135 = smul.u32 64, %s14
      %p1136 = scmp.lt.s32.totalorder %s1135, 255
      %s1137 = scalar_select %p1136, %s1135, 255
      %s1138 = smul.addr %s1137, 4
      %s1139 = scalar_lea.vmem %s3, %s1138
      // Predicated region
      $region33: #{tpu_custom_call.1} parent=31 // pred_check
        %p1140 = pneg %p100
      $region34: #{tpu_custom_call.1} parent=31 // pred_check_branch
        %1142 = sbr.rel (%p1140) target = $region36
      $region35: #{tpu_custom_call.1} parent=31 // pred_region
        %s1143 = smul.u32 64, %s14
      $region36: #{tpu_custom_call.1} parent=31 // pred_fallthru
        _
    $region32: #{tpu_custom_call.1} parent=5 // pred_fallthru
      _
    %p1144 = scmp.le.s32.totalorder 2, %s9
    // Predicated region
    $region37: #{tpu_custom_call.1} parent=5 // pred_check
      %p1145 = pneg %p1144
    $region38: #{tpu_custom_call.1} parent=5 // pred_check_branch
      %1147 = sbr.rel (%p1145) target = $region40
    $region39: #{tpu_custom_call.1} parent=5 // pred_region
      %s1148 = ssub.s32 %s9, 2
      // Predicated region
      $region41: #{tpu_custom_call.1} parent=39 // pred_check
        %p1149 = pneg %p106
      $region42: #{tpu_custom_call.1} parent=39 // pred_check_branch
        %1151 = sbr.rel (%p1149) target = $region44
      $region43: #{tpu_custom_call.1} parent=39 // pred_region
        %s1152 = smul.u32 64, %s15
        %p1153 = scmp.lt.s32.totalorder %s1152, 255
        %s1154 = scalar_select %p1153, %s1152, 255
        %s1155 = smul.addr %s1154, 4
        %s1156 = scalar_lea.vmem %s3, %s1155
      $region44: #{tpu_custom_call.1} parent=39 // pred_fallthru
        _
    $region40: #{tpu_custom_call.1} parent=5 // pred_fallthru
      _
  $region6: #{tpu_custom_call.1} parent=0 // loop_footer
    %s13 = sadd.s32 1, %s9
  $region7: #{tpu_custom_call.1} parent=0 // loop_footer_branch
    %8 = sbr.rel target = $region3
  $region8: #{tpu_custom_call.1} parent=0 // loop_exit
    _

</llo_original>
